<compile_context>
chip_gen: v6e
topology: v6e:2x2x1
jax: 0.10.0
libtpu: 0.0.40
codegen_flags: <defaults>
</compile_context>

<pallas_src>
import numpy as np
import jax
import jax.numpy as jnp
from jax.experimental import pallas as pl
from jax.experimental.pallas import tpu as pltpu


# ----------------------------------------------------------------------------
# helpers
# ----------------------------------------------------------------------------
def _round_up(x, m):
    return (x + m - 1) // m * m


def _device_kind():
    try:
        d = jax.devices()[0]
        if d.platform != "tpu":
            return ""
        return d.device_kind.lower()
    except Exception:
        return ""


_KIND = _device_kind()
# 256-wide Cout tiles match the 2x256x256 MXU on v6e/v7x; 128 on v5e/older.
_MAX_COUT_TILE = 256 if ("v6" in _KIND or "v7" in _KIND or "7x" in _KIND) else 128
# v7x has 64 MiB VMEM (leave headroom); v5e/v6e/v4 have 128 MiB.
_VMEM_LIMIT = (48 if ("v7" in _KIND or "7x" in _KIND or _KIND == "")
               else 96) * 1024 * 1024


def _choose_mode(cins, KH, KW):
    """How much of the conv window to fold into the contraction dim."""
    if min(cins) >= 128:
        return "none"      # K = Cin is already MXU-deep; no im2col duplication
    if sum(cins) * KH * KW <= 512:
        return "full"      # fold KH and KW -> single deep-K matmul (conv1/conv3)
    return "kw"            # fold KW only


# ----------------------------------------------------------------------------
# Pallas conv + bias + leaky-relu kernel
# ----------------------------------------------------------------------------
def _make_conv_kernel(n_in, rows, tap_offsets, tile_cout, negative_slope, upcast):
    """One grid step = one (batch image, Cout tile).

    tap_offsets[i] is a static tuple of flat-row offsets for input i; every tap
    contributes dot(x[off:off+rows, :K_i], w_i[tap]) to the accumulator.
    """

    def kernel(*refs):
        x_refs = refs[:n_in]                  # (1, rows_total_i, K_i) bf16
        w_refs = refs[n_in:2 * n_in]          # (T_i, K_i, tile_cout) bf16
        b_ref = refs[2 * n_in]                # (1, tile_cout) f32
        o_ref = refs[2 * n_in + 1]            # (1, rows, tile_cout) bf16

        acc = jnp.zeros((rows, tile_cout), jnp.float32)
        for i in range(n_in):                 # fused skip-concat inputs
            offs = tap_offsets[i]
            if upcast:
                # Un-duplicated activation loaded once; f32 so the odd (kx)
                # sublane offsets below are plain 32-bit shifts (no packed-bf16
                # relayout).  These layers are tiny, so f32 MXU rate is fine.
                v = x_refs[i][0].astype(jnp.float32)
                for t, off in enumerate(offs):
                    acc = acc + jnp.dot(v[off:off + rows, :], w_refs[i][t],
                                        preferred_element_type=jnp.float32)
            else:
                for t, off in enumerate(offs):
                    # offsets are multiples of 16 -> bf16 packed-tile aligned
                    patch = x_refs[i][0, off:off + rows, :]
                    acc = acc + jnp.dot(patch, w_refs[i][t],
                                        preferred_element_type=jnp.float32)

        y = acc + b_ref[...]
        y = jnp.maximum(y, negative_slope * y)          # LeakyReLU(0.1)
        o_ref[0] = y.astype(o_ref.dtype)                # lane-dense bf16 store

    return kernel


def conv2d_leaky(inputs, w, b, *, negative_slope=0.1):
    """Fused Conv2d (stride 1, 'same' padding, odd K) + bias + LeakyReLU.

    inputs: one NHWC array or a tuple of NHWC arrays whose channels are
            implicitly concatenated (fused skip-connection concat, same order
            as torch.cat((x, skip), 1)).
    w: (Cout, Cin_total, KH, KW) torch-layout weights;  b: (Cout,).
    Returns bf16 NHWC output."""
    if not isinstance(inputs, (tuple, list)):
        inputs = (inputs,)
    N, H, W, _ = inputs[0].shape
    Cout, Cin_total, KH, KW = w.shape
    cins = tuple(int(t.shape[-1]) for t in inputs)
    assert sum(cins) == Cin_total
    ph, pw = KH // 2, KW // 2
    Hp = H + 2 * ph

    mode = _choose_mode(cins, KH, KW)
    if mode == "none":
        Wstride = _round_up(W + 2 * pw, 8)    # flat row stride (input & output)
    else:
        Wstride = _round_up(W, 16)            # 16 -> bf16 tile-aligned ky slices
    rows = H * Wstride                        # output rows per image

    # Lane-dense output: pad Cout up to a multiple of 128.
    Cout_pad = max(128, _round_up(Cout, 128))
    tile_cout = min(Cout_pad, _MAX_COUT_TILE)
    n_co = Cout_pad // tile_cout

    w_t = jnp.transpose(w, (2, 3, 1, 0))      # (KH, KW, Cin_total, Cout)
    if Cout_pad > Cout:
        w_t = jnp.pad(w_t, ((0, 0), (0, 0), (0, 0), (0, Cout_pad - Cout)))
        b = jnp.pad(b, (0, Cout_pad - Cout))
    b2 = b.reshape(1, Cout_pad).astype(jnp.float32)

    xs, ws, tap_offsets = [], [], []
    off_c = 0
    for t in inputs:
        ci = int(t.shape[-1])
        tp = jnp.pad(t.astype(jnp.bfloat16),
                     ((0, 0), (ph, ph), (pw, pw), (0, 0)))      # (N,Hp,Wp,ci)
        wt_i = w_t[:, :, off_c:off_c + ci, :]                   # (KH,KW,ci,Cpad)
        if mode == "none":
            # No im2col duplication: the (ky, kx) tap is a flat row offset.
            xi = jnp.pad(tp, ((0, 0), (0, 0),
                              (0, Wstride - (W + 2 * pw)), (0, 0)))
            xi = xi.reshape(N, Hp * Wstride, ci)
            xi = jnp.pad(xi, ((0, 0), (0, 8), (0, 0)))   # cross-row bleed rows
            wi = wt_i.reshape(KH * KW, ci, Cout_pad)
            offs = tuple(ky * Wstride + kx
                         for ky in range(KH) for kx in range(KW))
        elif mode == "kw":
            st = jnp.concatenate([tp[:, :, kx:kx + W, :] for kx in range(KW)],
                                 axis=-1)                        # (N,Hp,W,KW*ci)
            st = jnp.pad(st, ((0, 0), (0, 0), (0, Wstride - W), (0, 0)))
            xi = st.reshape(N, Hp * Wstride, KW * ci)
            wi = wt_i.reshape(KH, KW * ci, Cout_pad)
            offs = tuple(ky * Wstride for ky in range(KH))
        else:  # "full": fold KH and KW -> one deep-K matmul
            st = jnp.concatenate(
                [tp[:, ky:ky + H, kx:kx + W, :]
                 for ky in range(KH) for kx in range(KW)], axis=-1)
            st = jnp.pad(st, ((0, 0), (0, 0), (0, Wstride - W), (0, 0)))
            xi = st.reshape(N, H * Wstride, KH * KW * ci)
            wi = wt_i.reshape(1, KH * KW * ci, Cout_pad)
            offs = (0,)
        xs.append(xi)
        ws.append(wi.astype(jnp.bfloat16))
        tap_offsets.append(offs)
        off_c += ci

    kernel = _make_conv_kernel(len(inputs), rows, tuple(tap_offsets),
                               tile_cout, negative_slope, mode == "none")

    in_specs = []
    for xi in xs:
        rt, ki = int(xi.shape[1]), int(xi.shape[2])
        in_specs.append(pl.BlockSpec((1, rt, ki), lambda co, n: (n, 0, 0)))
    for wi in ws:
        ti, ki = int(wi.shape[0]), int(wi.shape[1])
        in_specs.append(pl.BlockSpec((ti, ki, tile_cout),
                                     lambda co, n: (0, 0, co)))
    in_specs.append(pl.BlockSpec((1, tile_cout), lambda co, n: (0, co)))

    y = pl.pallas_call(
        kernel,
        out_shape=jax.ShapeDtypeStruct((N, rows, Cout_pad), jnp.bfloat16),
        grid=(n_co, N),   # batch inner -> weight block index constant (no re-DMA)
        in_specs=in_specs,
        out_specs=pl.BlockSpec((1, rows, tile_cout), lambda co, n: (n, 0, co)),
        compiler_params=pltpu.CompilerParams(
            dimension_semantics=("parallel", "parallel"),
            vmem_limit_bytes=_VMEM_LIMIT,
        ),
    )(*xs, *ws, b2)

    y = y.reshape(N, H, Wstride, Cout_pad)
    if Wstride > W or Cout_pad > Cout:
        y = y[:, :, :W, :Cout]
    return y


# ----------------------------------------------------------------------------
# Plain-JAX glue: avg-pool 2x2 and bilinear x2 upsample (align_corners=True)
# ----------------------------------------------------------------------------
def avg_pool2(x):
    N, H, W, C = x.shape
    y = x.astype(jnp.float32).reshape(N, H // 2, 2, W // 2, 2, C).mean(axis=(2, 4))
    return y.astype(x.dtype)


def _interp_matrix(n_in, n_out):
    # Static bilinear (align_corners=True) interpolation matrix: no gathers.
    A = np.zeros((n_out, n_in), np.float32)
    if n_in == 1:
        A[:, 0] = 1.0
    else:
        c = np.arange(n_out, dtype=np.float64) * (n_in - 1) / (n_out - 1)
        lo = np.floor(c).astype(np.int64)
        hi = np.minimum(lo + 1, n_in - 1)
        f = (c - lo).astype(np.float32)
        A[np.arange(n_out), lo] += 1.0 - f
        A[np.arange(n_out), hi] += f
    return jnp.asarray(A)


def upsample_bilinear_x2_align_corners(x):
    N, H, W, C = x.shape
    Ah = _interp_matrix(H, 2 * H)          # (2H, H)
    Aw = _interp_matrix(W, 2 * W)          # (2W, W)
    y = jnp.einsum("oh,nhwc->nowc", Ah, x.astype(jnp.float32))
    y = jnp.einsum("pw,nowc->nopc", Aw, y)
    return y.astype(x.dtype)


# ----------------------------------------------------------------------------
# Parameters (deterministic synthetic init) and forward pass
# ----------------------------------------------------------------------------
def layer_specs(in_channels, out_channels):
    return [
        ("conv1", in_channels, 32, 7), ("conv2", 32, 32, 7),
        ("down1_1", 32, 64, 5), ("down1_2", 64, 64, 5),
        ("down2_1", 64, 128, 3), ("down2_2", 128, 128, 3),
        ("down3_1", 128, 256, 3), ("down3_2", 256, 256, 3),
        ("down4_1", 256, 512, 3), ("down4_2", 512, 512, 3),
        ("down5_1", 512, 512, 3), ("down5_2", 512, 512, 3),
        ("up1_1", 512, 512, 3), ("up1_2", 2 * 512, 512, 3),
        ("up2_1", 512, 256, 3), ("up2_2", 2 * 256, 256, 3),
        ("up3_1", 256, 128, 3), ("up3_2", 2 * 128, 128, 3),
        ("up4_1", 128, 64, 3), ("up4_2", 2 * 64, 64, 3),
        ("up5_1", 64, 32, 3), ("up5_2", 2 * 32, 32, 3),
        ("conv3", 32, out_channels, 3),
    ]


def init_params(key, in_channels, out_channels):
    params = {}
    for i, (name, cin, cout, k) in enumerate(layer_specs(in_channels, out_channels)):
        kw, kb = jax.random.split(jax.random.fold_in(key, i))
        fan_in = cin * k * k
        w = jax.random.normal(kw, (cout, cin, k, k), jnp.float32) / np.sqrt(fan_in)
        b = 0.01 * jax.random.normal(kb, (cout,), jnp.float32)
        params[name] = (w, b)
    return params


def unet_forward(params, x):
    def c(name, *ts):
        w, b = params[name]
        return conv2d_leaky(ts, w, b)

    up = upsample_bilinear_x2_align_corners
    x = x.astype(jnp.bfloat16)              # all intermediates stay bf16
    x = c("conv1", x)
    s1 = c("conv2", x)
    s2 = avg_pool2(s1); s2 = c("down1_1", s2); s2 = c("down1_2", s2)
    s3 = avg_pool2(s2); s3 = c("down2_1", s3); s3 = c("down2_2", s3)
    s4 = avg_pool2(s3); s4 = c("down3_1", s4); s4 = c("down3_2", s4)
    s5 = avg_pool2(s4); s5 = c("down4_1", s5); s5 = c("down4_2", s5)
    x = avg_pool2(s5); x = c("down5_1", x); x = c("down5_2", x)
    # skip-connection concats are fused into the up*_2 conv kernels
    # (input order matches torch.cat((x, skip), 1))
    x = up(x); x = c("up1_1", x); x = c("up1_2", x, s5)
    x = up(x); x = c("up2_1", x); x = c("up2_2", x, s4)
    x = up(x); x = c("up3_1", x); x = c("up3_2", x, s3)
    x = up(x); x = c("up4_1", x); x = c("up4_2", x, s2)
    x = up(x); x = c("up5_1", x); x = c("up5_2", x, s1)
    x = c("conv3", x)
    return x.astype(jnp.float32)


# ----------------------------------------------------------------------------
# Reference conv (bf16-matched) for numerical self-checks
# ----------------------------------------------------------------------------
def _conv_leaky_ref(inputs, w, b, negative_slope=0.1):
    if not isinstance(inputs, (tuple, list)):
        inputs = (inputs,)
    x = jnp.concatenate([t for t in inputs], axis=-1)
    x = x.astype(jnp.bfloat16).astype(jnp.float32)
    wt = jnp.transpose(w, (2, 3, 1, 0)).astype(jnp.bfloat16).astype(jnp.float32)
    y = jax.lax.conv_general_dilated(
        x, wt, window_strides=(1, 1), padding="SAME",
        dimension_numbers=("NHWC", "HWIO", "NHWC"),
        precision=jax.lax.Precision.HIGHEST)
    y = y + b.reshape(1, 1, 1, -1)
    return jnp.maximum(y, negative_slope * y)


if __name__ == "__main__":
    key = jax.random.PRNGKey(0)
    in_channels, out_channels = 4, 4
    N, H, W = 2, 32, 32  # 5 pooling levels -> spatial must be divisible by 32

    k_par, k_x, k_chk = jax.random.split(key, 3)
    params = init_params(k_par, in_channels, out_channels)
    # NHWC input (equivalent PyTorch NCHW input shape would be (2, 4, 32, 32)).
    x = jax.random.normal(k_x, (N, H, W, in_channels), jnp.float32)

    # --- kernel self-checks against lax.conv (bf16-matched reference) --------
    ka, kb, kc, kd = jax.random.split(k_chk, 4)

    # full-fold path (tiny Cin, K=7)
    w1 = 0.05 * jax.random.normal(ka, (32, 4, 7, 7), jnp.float32)
    b1 = 0.01 * jax.random.normal(kb, (32,), jnp.float32)
    x1 = jax.random.normal(kc, (2, 16, 16, 4), jnp.float32)
    np.testing.assert_allclose(
        np.asarray(conv2d_leaky(x1, w1, b1), dtype=np.float32),
        np.asarray(_conv_leaky_ref(x1, w1, b1)), rtol=2e-2, atol=2e-2)

    # KW-fold path with fused two-input skip concat
    w2 = 0.05 * jax.random.normal(kb, (32, 64, 3, 3), jnp.float32)
    b2 = 0.01 * jax.random.normal(kc, (32,), jnp.float32)
    xa = jax.random.normal(kd, (2, 16, 16, 32), jnp.float32)
    xb = jax.random.normal(ka, (2, 16, 16, 32), jnp.float32)
    np.testing.assert_allclose(
        np.asarray(conv2d_leaky((xa, xb), w2, b2), dtype=np.float32),
        np.asarray(_conv_leaky_ref((xa, xb), w2, b2)), rtol=2e-2, atol=2e-2)

    # no-fold path (Cin >= 128) with padded Cout
    w3 = 0.05 * jax.random.normal(kc, (64, 128, 3, 3), jnp.float32)
    b3 = 0.01 * jax.random.normal(kd, (64,), jnp.float32)
    x3 = jax.random.normal(kb, (2, 8, 8, 128), jnp.float32)
    np.testing.assert_allclose(
        np.asarray(conv2d_leaky(x3, w3, b3), dtype=np.float32),
        np.asarray(_conv_leaky_ref(x3, w3, b3)), rtol=2e-2, atol=2e-2)

    # --- full forward pass ----------------------------------------------------
    fwd = jax.jit(unet_forward)
    y = jax.block_until_ready(fwd(params, x))
    assert y.shape == (N, H, W, out_channels), y.shape
    assert bool(jnp.all(jnp.isfinite(y)))
    print("KERNEL_OK")
</pallas_src>

<mosaic_0001>
module attributes {stable_mosaic.version = 11 : i64} {
  func.func @kernel(%arg0: i32, %arg1: i32, %arg2: memref<1x256x196xbf16, #tpu.memory_space<vmem>>, %arg3: memref<1x196x128xbf16, #tpu.memory_space<vmem>>, %arg4: memref<1x128xf32, #tpu.memory_space<vmem>>, %arg5: memref<1x256x128xbf16, #tpu.memory_space<vmem>>) attributes {dimension_semantics = [#tpu.dimension_semantics<parallel>, #tpu.dimension_semantics<parallel>], iteration_bounds = array<i64: 1, 2>, scalar_prefetch = 0 : i64, scratch_operands = 0 : i64, tpu.core_type = #tpu.core_type<tc>, window_params = [{transform_indices = @transform_0, window_bounds = array<i64: 1, 256, 196>}, {transform_indices = @transform_1, window_bounds = array<i64: 1, 196, 128>}, {transform_indices = @transform_2, window_bounds = array<i64: 1, 128>}, {transform_indices = @transform_3, window_bounds = array<i64: 1, 256, 128>}]} {
    %cst = arith.constant 0.000000e+00 : f32
    %0 = vector.broadcast %cst : f32 to vector<256x128xf32>
    %c0 = arith.constant 0 : index
    %c0_0 = arith.constant 0 : index
    %c0_1 = arith.constant 0 : index
    %1 = vector.load %arg2[%c0, %c0_0, %c0_1] : memref<1x256x196xbf16, #tpu.memory_space<vmem>>, vector<1x256x196xbf16>
    %2 = vector.shape_cast %1 : vector<1x256x196xbf16> to vector<256x196xbf16>
    %c0_2 = arith.constant 0 : index
    %c0_3 = arith.constant 0 : index
    %c0_4 = arith.constant 0 : index
    %3 = vector.load %arg3[%c0_2, %c0_3, %c0_4] : memref<1x196x128xbf16, #tpu.memory_space<vmem>>, vector<1x196x128xbf16>
    %4 = vector.shape_cast %3 : vector<1x196x128xbf16> to vector<196x128xbf16>
    %cst_5 = arith.constant dense<0.000000e+00> : vector<256x128xf32>
    %5 = tpu.matmul %2, %4, %cst_5 {dimension_numbers = #tpu.dot_dimension_numbers<[1], [0], [0], [1], [0, 0, 1, 1], [], []>} : vector<256x196xbf16>, vector<196x128xbf16>, vector<256x128xf32> -> vector<256x128xf32>
    %6 = arith.addf %0, %5 : vector<256x128xf32>
    %c0_6 = arith.constant 0 : index
    %c0_7 = arith.constant 0 : index
    %7 = vector.load %arg4[%c0_6, %c0_7] : memref<1x128xf32, #tpu.memory_space<vmem>>, vector<1x128xf32>
    %8 = vector.broadcast %7 : vector<1x128xf32> to vector<256x128xf32>
    %9 = arith.addf %6, %8 : vector<256x128xf32>
    %cst_8 = arith.constant 1.000000e-01 : f32
    %10 = vector.broadcast %cst_8 : f32 to vector<256x128xf32>
    %11 = arith.mulf %10, %9 : vector<256x128xf32>
    %12 = arith.maximumf %9, %11 : vector<256x128xf32>
    %13 = arith.truncf %12 : vector<256x128xf32> to vector<256x128xbf16>
    %c0_9 = arith.constant 0 : index
    %c0_10 = arith.constant 0 : index
    %c0_11 = arith.constant 0 : index
    %14 = vector.load %arg5[%c0_9, %c0_10, %c0_11] : memref<1x256x128xbf16, #tpu.memory_space<vmem>>, vector<1x256x128xbf16>
    %15 = vector.shape_cast %14 : vector<1x256x128xbf16> to vector<256x128xbf16>
    %16 = vector.shape_cast %13 : vector<256x128xbf16> to vector<1x256x128xbf16>
    tpu.vector_store %arg5[%c0_9, %c0_10, %c0_11], %16 {strides = array<i32>} : memref<1x256x128xbf16, #tpu.memory_space<vmem>>, vector<1x256x128xbf16>,
    return
  }
  func.func @transform_0(%arg0: i32, %arg1: i32) -> (i32, i32, i32) {
    %c0_i32 = arith.constant 0 : i32
    %c0_i32_0 = arith.constant 0 : i32
    %c0_i32_1 = arith.constant 0 : i32
    return %arg1, %c0_i32, %c0_i32_0 : i32, i32, i32
  }
  func.func @transform_1(%arg0: i32, %arg1: i32) -> (i32, i32, i32) {
    %c0_i32 = arith.constant 0 : i32
    %c0_i32_0 = arith.constant 0 : i32
    %c0_i32_1 = arith.constant 0 : i32
    return %c0_i32, %c0_i32_0, %arg0 : i32, i32, i32
  }
  func.func @transform_2(%arg0: i32, %arg1: i32) -> (i32, i32) {
    %c0_i32 = arith.constant 0 : i32
    %c0_i32_0 = arith.constant 0 : i32
    return %c0_i32, %arg0 : i32, i32
  }
  func.func @transform_3(%arg0: i32, %arg1: i32) -> (i32, i32, i32) {
    %c0_i32 = arith.constant 0 : i32
    %c0_i32_0 = arith.constant 0 : i32
    return %arg1, %c0_i32, %arg0 : i32, i32, i32
  }
}

</mosaic_0001>

<llo_original>
// kernel: tpu_custom_call.1
$region0: #{tpu_custom_call.1}
  #allocation0 [shape = 'u32[]', space=smem, size = 0x4, offset = 0x4, fixed_abs, tag = 'smem constant byte address 0x4 - core index']
  #allocation1 [shape = 'u32[144,128]{1,0:T(1,128)}', space=vmem, size = 0x12000, scoped, tag = 'internal scratch']
  %s0 = inlined_call_operand.vmem [shape: bf16[2,256,196], index: 0, kind: input, shape index: {}]
  %s1 = inlined_call_operand.vmem [shape: bf16[1,196,128], index: 1, kind: input, shape index: {}]
  %s2 = inlined_call_operand.vmem [shape: f32[1,128], index: 2, kind: input, shape index: {}]
  %s3 = inlined_call_operand.hbm [shape: bf16[2,256,128], index: 3, kind: output, shape index: {}]
  %s4 = sld [smem:[#allocation0]]
  $region45: #{tpu_custom_call.1} parent=0
    _
  %s6 = ssub.s32 1, %s4
  %s7 = scalar_select 0, %s6, %s4
  $region1: #{tpu_custom_call.1} parent=0
    #allocation2 [shape = 'u8[131072]{0}', space=vmem, size = 0x20000, scoped, tag = 'output window, operand 0']
    #allocation3 [shape = 's32[2]{0}', space=sflag, size = 0x8, scoped, tag = 'scoped memory for tpu_custom_call.1']
    %8 = vsyncpa [#allocation3], 0
    %s9 = scalar_lea.sflag [#allocation3], 1
    %10 = vsyncpa %s9, 0
    loop: start=0, step=1, limit=4
    $region2: #{tpu_custom_call.1} parent=1 // loop_pre_header
      _
    $region3: #{tpu_custom_call.1} parent=1 // loop_header
      %s12 = sphi 0, %s16
      %p13 = scmp.ge.s32.totalorder %s12, 4
      %s19 = sphi 0, %s31
      %s20 = sphi 0, %s27
      %s21 = sphi 0, %s19
      %s22 = sphi 0, %s20
      %s23 = sphi 0, %s21
      %s24 = sphi 0, %s22
      %s34 = sphi 0, %s36
      %s37 = sphi 0, %s34
      %s38 = sphi 0, %s37
      %s54 = sphi 0, %s38
      %s60 = sphi 0, %s62
      %s63 = sphi 0, %s60
      %s64 = sphi 0, %s63
      %s80 = sphi 0, %s64
      %s86 = sphi 0, %s88
      %s89 = sphi 0, %s86
      %s90 = sphi 0, %s89
      %s106 = sphi 0, %s90
      %s114 = sphi 0, %s116
      %s117 = sphi 0, %s114
      %s118 = sphi 0, %s117
      %s134 = sphi 0, %s118
    $region4: #{tpu_custom_call.1} parent=1 // loop_header_branch
      %15 = sbr.rel (%p13) target = $region8
    $region5: #{tpu_custom_call.1} parent=1 // loop_body
      %s17 = ssub.s32 %s12, 1
      %s18 = ssub.s32 %s12, 2
      %s25 = sadd.s32 1, %s20
      %p26 = scmp.ge.s32.totalorder %s25, 2
      %s27 = scalar_select %p26, 0, %s25
      %s28 = sadd.s32 1, %s19
      %s29 = scalar_select %p26, %s28, %s19
      %p30 = scmp.ge.s32.totalorder %s29, 1
      %s31 = scalar_select %p30, 0, %s29
      %s32 = ssub.s32 %s20, %s27
      %p33 = scmp.eq.s32.totalorder %s32, 0
      %s35 = sadd.s32 %s34, 1
      %s36 = scalar_select %p33, %s34, %s35
      %p39 = pneg %p33
      %p40 = scmp.eq.s32.totalorder %s12, 1
      %p41 = por %p39, %p40
      %p42 = scmp.ne.s32.totalorder %s34, %s37
      %p43 = scmp.eq.s32.totalorder %s12, 0
      %p44 = por %p42, %p43
      %p45 = scmp.ne.s32.totalorder %s34, %s37
      %p46 = scmp.eq.s32.totalorder %s17, 1
      %p47 = por %p45, %p46
      %p48 = scmp.ne.s32.totalorder %s37, %s38
      %p49 = scmp.eq.s32.totalorder %s17, 0
      %p50 = por %p48, %p49
      %p51 = scmp.ne.s32.totalorder %s37, %s38
      %p52 = scmp.eq.s32.totalorder %s18, 1
      %p53 = por %p51, %p52
      %p55 = scmp.ne.s32.totalorder %s38, %s54
      %p56 = scmp.eq.s32.totalorder %s18, 0
      %p57 = por %p55, %p56
      %s58 = ssub.s32 %s19, %s31
      %p59 = scmp.eq.s32.totalorder %s58, 0
      %s61 = sadd.s32 %s60, 1
      %s62 = scalar_select %p59, %s60, %s61
      %p65 = pneg %p59
      %p66 = scmp.eq.s32.totalorder %s12, 1
      %p67 = por %p65, %p66
      %p68 = scmp.ne.s32.totalorder %s60, %s63
      %p69 = scmp.eq.s32.totalorder %s12, 0
      %p70 = por %p68, %p69
      %p71 = scmp.ne.s32.totalorder %s60, %s63
      %p72 = scmp.eq.s32.totalorder %s17, 1
      %p73 = por %p71, %p72
      %p74 = scmp.ne.s32.totalorder %s63, %s64
      %p75 = scmp.eq.s32.totalorder %s17, 0
      %p76 = por %p74, %p75
      %p77 = scmp.ne.s32.totalorder %s63, %s64
      %p78 = scmp.eq.s32.totalorder %s18, 1
      %p79 = por %p77, %p78
      %p81 = scmp.ne.s32.totalorder %s64, %s80
      %p82 = scmp.eq.s32.totalorder %s18, 0
      %p83 = por %p81, %p82
      %s84 = ssub.s32 %s19, %s31
      %p85 = scmp.eq.s32.totalorder %s84, 0
      %s87 = sadd.s32 %s86, 1
      %s88 = scalar_select %p85, %s86, %s87
      %p91 = pneg %p85
      %p92 = scmp.eq.s32.totalorder %s12, 1
      %p93 = por %p91, %p92
      %p94 = scmp.ne.s32.totalorder %s86, %s89
      %p95 = scmp.eq.s32.totalorder %s12, 0
      %p96 = por %p94, %p95
      %p97 = scmp.ne.s32.totalorder %s86, %s89
      %p98 = scmp.eq.s32.totalorder %s17, 1
      %p99 = por %p97, %p98
      %p100 = scmp.ne.s32.totalorder %s89, %s90
      %p101 = scmp.eq.s32.totalorder %s17, 0
      %p102 = por %p100, %p101
      %p103 = scmp.ne.s32.totalorder %s89, %s90
      %p104 = scmp.eq.s32.totalorder %s18, 1
      %p105 = por %p103, %p104
      %p107 = scmp.ne.s32.totalorder %s90, %s106
      %p108 = scmp.eq.s32.totalorder %s18, 0
      %p109 = por %p107, %p108
      %s110 = ssub.s32 %s20, %s27
      %s111 = ssub.s32 %s19, %s31
      %s112 = sor.u32 %s110, %s111
      %p113 = scmp.eq.s32.totalorder %s112, 0
      %s115 = sadd.s32 %s114, 1
      %s116 = scalar_select %p113, %s114, %s115
      %p119 = pneg %p113
      %p120 = scmp.eq.s32.totalorder %s12, 1
      %p121 = por %p119, %p120
      %p122 = scmp.ne.s32.totalorder %s114, %s117
      %p123 = scmp.eq.s32.totalorder %s12, 0
      %p124 = por %p122, %p123
      %p125 = scmp.ne.s32.totalorder %s114, %s117
      %p126 = scmp.eq.s32.totalorder %s17, 1
      %p127 = por %p125, %p126
      %p128 = scmp.ne.s32.totalorder %s117, %s118
      %p129 = scmp.eq.s32.totalorder %s17, 0
      %p130 = por %p128, %p129
      %p131 = scmp.ne.s32.totalorder %s117, %s118
      %p132 = scmp.eq.s32.totalorder %s18, 1
      %p133 = por %p131, %p132
      %p135 = scmp.ne.s32.totalorder %s118, %s134
      %p136 = scmp.eq.s32.totalorder %s18, 0
      %p137 = por %p135, %p136
      %p138 = scmp.le.s32.totalorder 1, %s12
      %p139 = scmp.lt.s32.totalorder %s12, 3
      %p140 = pnand %p138, %p139
      %p141 = pneg %p140
      // Predicated region
      $region9: #{tpu_custom_call.1} parent=5 // pred_check
        _
      $region10: #{tpu_custom_call.1} parent=5 // pred_check_branch
        %143 = sbr.rel (%p140) target = $region12
      $region11: #{tpu_custom_call.1} parent=5 // pred_region
        %s144 = ssub.s32 %s12, 1
        // Predicated region
        $region13: #{tpu_custom_call.1} parent=11 // pred_check
          %p145 = pneg %p76
        $region14: #{tpu_custom_call.1} parent=11 // pred_check_branch
          %147 = sbr.rel (%p145) target = $region16
        $region15: #{tpu_custom_call.1} parent=11 // pred_region
          %p148 = scmp.lt.s32.totalorder %s21, 0
          %s149 = scalar_select %p148, %s21, 0
          %s150 = smul.addr %s149, 4
          %s151 = scalar_lea.vmem %s1, %s150
        $region16: #{tpu_custom_call.1} parent=11 // pred_fallthru
          _
        // Predicated region
        $region17: #{tpu_custom_call.1} parent=11 // pred_check
          %p152 = pneg %p102
        $region18: #{tpu_custom_call.1} parent=11 // pred_check_branch
          %154 = sbr.rel (%p152) target = $region20
        $region19: #{tpu_custom_call.1} parent=11 // pred_region
          %p155 = scmp.lt.s32.totalorder %s21, 0
          %s156 = scalar_select %p155, %s21, 0
          %s157 = scalar_lea.vmem %s2, %s156
        $region20: #{tpu_custom_call.1} parent=11 // pred_fallthru
          _
      $region12: #{tpu_custom_call.1} parent=5 // pred_fallthru
        _
      %p158 = scmp.lt.s32.totalorder %s12, 2
      // Predicated region
      $region21: #{tpu_custom_call.1} parent=5 // pred_check
        %p159 = pneg %p158
      $region22: #{tpu_custom_call.1} parent=5 // pred_check_branch
        %161 = sbr.rel (%p159) target = $region24
      $region23: #{tpu_custom_call.1} parent=5 // pred_region
        // Predicated region
        $region25: #{tpu_custom_call.1} parent=23 // pred_check
          %p162 = pneg %p44
        $region26: #{tpu_custom_call.1} parent=23 // pred_check_branch
          %164 = sbr.rel (%p162) target = $region28
        $region27: #{tpu_custom_call.1} parent=23 // pred_region
          %p165 = scmp.lt.s32.totalorder %s20, 1
          %s166 = scalar_select %p165, %s20, 1
          %s167 = smul.addr %s166, 64
          %s168 = smul.addr %s167, 4
          %s169 = scalar_lea.vmem %s0, %s168
        $region28: #{tpu_custom_call.1} parent=23 // pred_fallthru
          _
      $region24: #{tpu_custom_call.1} parent=5 // pred_fallthru
        _
      %p170 = scmp.le.s32.totalorder 1, %s12
      %p171 = scmp.lt.s32.totalorder %s12, 3
      %p172 = pnand %p170, %p171
      %p173 = pneg %p172
      // Predicated region
      $region29: #{tpu_custom_call.1} parent=5 // pred_check
        _
      $region30: #{tpu_custom_call.1} parent=5 // pred_check_branch
        %175 = sbr.rel (%p172) target = $region32
      $region31: #{tpu_custom_call.1} parent=5 // pred_region
        %s176 = ssub.s32 %s12, 1
        %p177 = scmp.lt.s32.totalorder %s22, 1
        %s178 = scalar_select %p177, %s22, 1
        %s179 = smul.addr %s178, 64
        %s180 = smul.addr %s179, 4
        %s181 = scalar_lea.vmem %s0, %s180
        %p182 = pneg %p50
        %p183 = pneg %p47
        %p184 = scmp.lt.s32.totalorder %s21, 0
        %s185 = scalar_select %p184, %s21, 0
        %s186 = smul.addr %s185, 4
        %s187 = scalar_lea.vmem %s1, %s186
        %p188 = pneg %p76
        %p189 = pneg %p73
        %p190 = scmp.lt.s32.totalorder %s21, 0
        %s191 = scalar_select %p190, %s21, 0
        %s192 = scalar_lea.vmem %s2, %s191
        %p193 = pneg %p102
        %p194 = pneg %p99
        %p195 = pneg %p130
        %p196 = pneg %p127
        %s197 = sand.u32 %s117, 1
        %s198 = scalar_lea.sflag [#allocation3], %s197
        %s199 = sand.u32 %s117, 1
        %s200 = smul.addr %s199, 128
        %s201 = scalar_lea.vmem [#allocation2], %s200
        %p202 = scmp.lt.s32.totalorder %s22, 1
        %s203 = scalar_select %p202, %s22, 1
        %s204 = smul.addr %s203, 64
        %s205 = smul.addr %s204, 4
        %s206 = scalar_lea.vmem %s0, %s205
        %p207 = scmp.lt.s32.totalorder %s21, 0
        %s208 = scalar_select %p207, %s21, 0
        %s209 = smul.addr %s208, 4
        %s210 = scalar_lea.vmem %s1, %s209
        %p211 = scmp.lt.s32.totalorder %s21, 0
        %s212 = scalar_select %p211, %s21, 0
        %s213 = scalar_lea.vmem %s2, %s212
        %v215 = vld [vmem:[%s206] sm:$0xff]
        %v216 = vld [vmem:[%s206 + $0x8] sm:$0xff]
        %v217 = vld [vmem:[%s206 + $0x10] sm:$0xff]
        %v218 = vld [vmem:[%s206 + $0x18] sm:$0xff]
        %v219 = vld [vmem:[%s206 + $0x20] sm:$0xff]
        %v220 = vld [vmem:[%s206 + $0x28] sm:$0xff]
        %v221 = vld [vmem:[%s206 + $0x30] sm:$0xff]
        %v222 = vld [vmem:[%s206 + $0x38] sm:$0xff]
        %v223 = vld [vmem:[%s206 + $0x40] sm:$0xff]
        %v224 = vld [vmem:[%s206 + $0x48] sm:$0xff]
        %v225 = vld [vmem:[%s206 + $0x50] sm:$0xff]
        %v226 = vld [vmem:[%s206 + $0x58] sm:$0xff]
        %v227 = vld [vmem:[%s206 + $0x60] sm:$0xff]
        %v228 = vld [vmem:[%s206 + $0x68] sm:$0xff]
        %v229 = vld [vmem:[%s206 + $0x70] sm:$0xff]
        %v230 = vld [vmem:[%s206 + $0x78] sm:$0xff]
        %v231 = vld [vmem:[%s206 + $0x80] sm:$0xff]
        %v232 = vld [vmem:[%s206 + $0x88] sm:$0xff]
        %v233 = vld [vmem:[%s206 + $0x90] sm:$0xff]
        %v234 = vld [vmem:[%s206 + $0x98] sm:$0xff]
        %v235 = vld [vmem:[%s206 + $0xa0] sm:$0xff]
        %v236 = vld [vmem:[%s206 + $0xa8] sm:$0xff]
        %v237 = vld [vmem:[%s206 + $0xb0] sm:$0xff]
        %v238 = vld [vmem:[%s206 + $0xb8] sm:$0xff]
        %v239 = vld [vmem:[%s206 + $0xc0] sm:$0xff]
        %v240 = vld [vmem:[%s206 + $0xc8] sm:$0xff]
        %v241 = vld [vmem:[%s206 + $0xd0] sm:$0xff]
        %v242 = vld [vmem:[%s206 + $0xd8] sm:$0xff]
        %v243 = vld [vmem:[%s206 + $0xe0] sm:$0xff]
        %v244 = vld [vmem:[%s206 + $0xe8] sm:$0xff]
        %v245 = vld [vmem:[%s206 + $0xf0] sm:$0xff]
        %v246 = vld [vmem:[%s206 + $0xf8] sm:$0xff]
        %v247 = vld [vmem:[%s210] sm:$0xf]
        %v248 = vld [vmem:[%s210 + $0x4] sm:$0xf]
        %v249 = vld [vmem:[%s210 + $0x8] sm:$0xf]
        %v250 = vld [vmem:[%s210 + $0xc] sm:$0xf]
        %v251 = vld [vmem:[%s210 + $0x10] sm:$0xf]
        %v252 = vld [vmem:[%s210 + $0x14] sm:$0xf]
        %v253 = vld [vmem:[%s210 + $0x18] sm:$0xf]
        %v254 = vld [vmem:[%s210 + $0x1c] sm:$0xf]
        %v255 = vld [vmem:[%s210 + $0x20] sm:$0xf]
        %v256 = vld [vmem:[%s210 + $0x24] sm:$0xf]
        %v257 = vld [vmem:[%s210 + $0x28] sm:$0xf]
        %v258 = vld [vmem:[%s210 + $0x2c] sm:$0xf]
        %v259 = vld [vmem:[%s210 + $0x30] sm:$0xf]
        %v260 = vld [vmem:[%s210 + $0x34] sm:$0xf]
        %v261 = vld [vmem:[%s210 + $0x38] sm:$0xf]
        %v262 = vld [vmem:[%s210 + $0x3c] sm:$0xf]
        %v263 = vld [vmem:[%s210 + $0x40] sm:$0xf]
        %v264 = vld [vmem:[%s210 + $0x44] sm:$0xf]
        %v265 = vld [vmem:[%s210 + $0x48] sm:$0xf]
        %v266 = vld [vmem:[%s210 + $0x4c] sm:$0xf]
        %v267 = vld [vmem:[%s210 + $0x50] sm:$0xf]
        %v268 = vld [vmem:[%s210 + $0x54] sm:$0xf]
        %v269 = vld [vmem:[%s210 + $0x58] sm:$0xf]
        %v270 = vld [vmem:[%s210 + $0x5c] sm:$0xf]
        %v271 = vld [vmem:[%s210 + $0x60] sm:$0x3]
        %v272 = vld [vmem:[%s213] sm:$0x1]
        %v274 = vlaneseq
        %v275 = vshrl.u32 %v274, 7
        %v276 = vsub.s32 0, %v275
        %v277 = vrot.slane %v272, %v276
        %v311 = vunpack.c.l.b16 %v215
        %v312 = vunpack.c.h.b16 %v215
        %v313 = vunpack.c.l.b16 %v216
        %v314 = vunpack.c.h.b16 %v216
        %v315 = vunpack.c.l.b16 %v217
        %v316 = vunpack.c.h.b16 %v217
        %v317 = vunpack.c.l.b16 %v218
        %v318 = vunpack.c.h.b16 %v218
        %v319 = vunpack.c.l.b16 %v219
        %v320 = vunpack.c.h.b16 %v219
        %v321 = vunpack.c.l.b16 %v220
        %v322 = vunpack.c.h.b16 %v220
        %v323 = vunpack.c.l.b16 %v221
        %v324 = vunpack.c.h.b16 %v221
        %v325 = vunpack.c.l.b16 %v222
        %v326 = vunpack.c.h.b16 %v222
        %v327 = vunpack.c.l.b16 %v223
        %v328 = vunpack.c.h.b16 %v223
        %v329 = vunpack.c.l.b16 %v224
        %v330 = vunpack.c.h.b16 %v224
        %v331 = vunpack.c.l.b16 %v225
        %v332 = vunpack.c.h.b16 %v225
        %v333 = vunpack.c.l.b16 %v226
        %v334 = vunpack.c.h.b16 %v226
        %v335 = vunpack.c.l.b16 %v227
        %v336 = vunpack.c.h.b16 %v227
        %v337 = vunpack.c.l.b16 %v228
        %v338 = vunpack.c.h.b16 %v228
        %v339 = vunpack.c.l.b16 %v229
        %v340 = vunpack.c.h.b16 %v229
        %v341 = vunpack.c.l.b16 %v230
        %v342 = vunpack.c.h.b16 %v230
        %v343 = vunpack.c.l.b16 %v231
        %v344 = vunpack.c.h.b16 %v231
        %v345 = vunpack.c.l.b16 %v232
        %v346 = vunpack.c.h.b16 %v232
        %v347 = vunpack.c.l.b16 %v233
        %v348 = vunpack.c.h.b16 %v233
        %v349 = vunpack.c.l.b16 %v234
        %v350 = vunpack.c.h.b16 %v234
        %v351 = vunpack.c.l.b16 %v235
        %v352 = vunpack.c.h.b16 %v235
        %v353 = vunpack.c.l.b16 %v236
        %v354 = vunpack.c.h.b16 %v236
        %v355 = vunpack.c.l.b16 %v237
        %v356 = vunpack.c.h.b16 %v237
        %v357 = vunpack.c.l.b16 %v238
        %v358 = vunpack.c.h.b16 %v238
        %v359 = vunpack.c.l.b16 %v239
        %v360 = vunpack.c.h.b16 %v239
        %v361 = vunpack.c.l.b16 %v240
        %v362 = vunpack.c.h.b16 %v240
        %v363 = vunpack.c.l.b16 %v241
        %v364 = vunpack.c.h.b16 %v241
        %v365 = vunpack.c.l.b16 %v242
        %v366 = vunpack.c.h.b16 %v242
        %v367 = vunpack.c.l.b16 %v243
        %v368 = vunpack.c.h.b16 %v243
        %v369 = vunpack.c.l.b16 %v244
        %v370 = vunpack.c.h.b16 %v244
        %v371 = vunpack.c.l.b16 %v245
        %v372 = vunpack.c.h.b16 %v245
        %v373 = vunpack.c.l.b16 %v246
        %v374 = vunpack.c.h.b16 %v246
        %v375 = vpack.c.b16 %v313, %v311
        %v376 = vpack.c.b16 %v314, %v312
        %v377 = vpack.c.b16 %v317, %v315
        %v378 = vpack.c.b16 %v318, %v316
        %v379 = vpack.c.b16 %v321, %v319
        %v380 = vpack.c.b16 %v322, %v320
        %v381 = vpack.c.b16 %v325, %v323
        %v382 = vpack.c.b16 %v326, %v324
        %v383 = vpack.c.b16 %v329, %v327
        %v384 = vpack.c.b16 %v330, %v328
        %v385 = vpack.c.b16 %v333, %v331
        %v386 = vpack.c.b16 %v334, %v332
        %v387 = vpack.c.b16 %v337, %v335
        %v388 = vpack.c.b16 %v338, %v336
        %v389 = vpack.c.b16 %v341, %v339
        %v390 = vpack.c.b16 %v342, %v340
        %v391 = vpack.c.b16 %v345, %v343
        %v392 = vpack.c.b16 %v346, %v344
        %v393 = vpack.c.b16 %v349, %v347
        %v394 = vpack.c.b16 %v350, %v348
        %v395 = vpack.c.b16 %v353, %v351
        %v396 = vpack.c.b16 %v354, %v352
        %v397 = vpack.c.b16 %v357, %v355
        %v398 = vpack.c.b16 %v358, %v356
        %v399 = vpack.c.b16 %v361, %v359
        %v400 = vpack.c.b16 %v362, %v360
        %v401 = vpack.c.b16 %v365, %v363
        %v402 = vpack.c.b16 %v366, %v364
        %v403 = vpack.c.b16 %v369, %v367
        %v404 = vpack.c.b16 %v370, %v368
        %v405 = vpack.c.b16 %v373, %v371
        %v406 = vpack.c.b16 %v374, %v372
        %v448 = vunpack.c.l.b16 %v247
        %v449 = vunpack.c.l.b16 %v248
        %v450 = vunpack.c.l.b16 %v249
        %v451 = vunpack.c.l.b16 %v250
        %v452 = vunpack.c.l.b16 %v251
        %v453 = vunpack.c.l.b16 %v252
        %v454 = vunpack.c.l.b16 %v253
        %v455 = vunpack.c.l.b16 %v254
        %v456 = vunpack.c.l.b16 %v255
        %v457 = vunpack.c.l.b16 %v256
        %v458 = vunpack.c.l.b16 %v257
        %v459 = vunpack.c.l.b16 %v258
        %v460 = vunpack.c.l.b16 %v259
        %v461 = vunpack.c.l.b16 %v260
        %v462 = vunpack.c.l.b16 %v261
        %v463 = vunpack.c.l.b16 %v262
        %v464 = vunpack.c.l.b16 %v263
        %v465 = vunpack.c.l.b16 %v264
        %v466 = vunpack.c.l.b16 %v265
        %v467 = vunpack.c.l.b16 %v266
        %v468 = vunpack.c.l.b16 %v267
        %v469 = vunpack.c.l.b16 %v268
        %v470 = vunpack.c.l.b16 %v269
        %v471 = vunpack.c.l.b16 %v270
        %v472 = vunpack.c.l.b16 %v271
        %v473 = vpack.c.b16 %v449, %v448
        %v474 = vpack.c.b16 %v451, %v450
        %v475 = vpack.c.b16 %v453, %v452
        %v476 = vpack.c.b16 %v455, %v454
        %v477 = vpack.c.b16 %v457, %v456
        %v478 = vpack.c.b16 %v459, %v458
        %v479 = vpack.c.b16 %v461, %v460
        %v480 = vpack.c.b16 %v463, %v462
        %v481 = vpack.c.b16 %v465, %v464
        %v482 = vpack.c.b16 %v467, %v466
        %v483 = vpack.c.b16 %v469, %v468
        %v484 = vpack.c.b16 %v471, %v470
        %v485 = vpack.c.b16 %v472, %v472
        %vm498 = vcmask 556032
        %v500 = vsel %vm498, %v376, 0
        %v503 = vsel %vm498, %v378, 0
        %v506 = vsel %vm498, %v380, 0
        %v509 = vsel %vm498, %v382, 0
        %v512 = vsel %vm498, %v384, 0
        %v515 = vsel %vm498, %v386, 0
        %v518 = vsel %vm498, %v388, 0
        %v521 = vsel %vm498, %v390, 0
        %v524 = vsel %vm498, %v392, 0
        %v527 = vsel %vm498, %v394, 0
        %v530 = vsel %vm498, %v396, 0
        %v533 = vsel %vm498, %v398, 0
        %v536 = vsel %vm498, %v400, 0
        %v539 = vsel %vm498, %v402, 0
        %v542 = vsel %vm498, %v404, 0
        %v545 = vsel %vm498, %v406, 0
        %vm547 = vcmask 1041408
        %v549 = vsel %vm547, %v485, 0
        %551 = vmatprep.subr.bf16.mxu0 0
        %552 = vmatpush1.bf16.msra.mxu0 %v480
        %553 = vmatprep.subr.bf16.mxu0 0
        %554 = vmatpush1.bf16.msra.mxu0 %v479
        %555 = vmatprep.subr.bf16.mxu0 0
        %556 = vmatpush1.bf16.msra.mxu0 %v478
        %557 = vmatprep.subr.bf16.mxu0 0
        %558 = vmatpush1.bf16.msra.mxu0 %v477
        %559 = vmatprep.subr.bf16.mxu0 0
        %560 = vmatpush1.bf16.msra.mxu0 %v476
        %561 = vmatprep.subr.bf16.mxu0 0
        %562 = vmatpush1.bf16.msra.mxu0 %v475
        %563 = vmatprep.subr.bf16.mxu0 0
        %564 = vmatpush1.bf16.msra.mxu0 %v474
        %565 = vmatprep.subr.bf16.mxu0 0
        %566 = vmatpush1.bf16.msra.mxu0 %v473
        %567 = vmatprep.subr.bf16.mxu0 0
        %568 = vmatpush2.bf16.msra.mxu0 0
        %569 = vmatprep.subr.bf16.mxu0 0
        %570 = vmatpush2.bf16.msra.mxu0 0
        %571 = vmatprep.subr.bf16.mxu0 0
        %572 = vmatpush2.bf16.msra.mxu0 0
        %573 = vmatprep.subr.bf16.mxu0 0
        %574 = vmatpush2.bf16.msra.mxu0 %v549
        %575 = vmatprep.subr.bf16.mxu0 0
        %576 = vmatpush2.bf16.msra.mxu0 %v484
        %577 = vmatprep.subr.bf16.mxu0 0
        %578 = vmatpush2.bf16.msra.mxu0 %v483
        %579 = vmatprep.subr.bf16.mxu0 0
        %580 = vmatpush2.bf16.msra.mxu0 %v482
        %581 = vmatprep.subr.bf16.mxu0 0
        %582 = vmatpush2.bf16.msra.mxu0 %v481
        %583 = vmatprep.mubr.bf16.mxu0 %v500
        %584 = vmatmul.mubr.bf16.gmra.mxu0 %v375
        %v585 = vpop.f32.mrf.mxu0
        %v586 = vadd.f32 %v277, %v585
        %v587 = vpop.f32.mrf.mxu0
        %v588 = vpop.f32.mrf.mxu0
        %v589 = vadd.f32 %v277, %v588
        %v590 = vpop.f32.mrf.mxu0
        %591 = vmatprep.mubr.bf16.mxu0 %v503
        %592 = vmatmul.mubr.bf16.gmra.mxu0 %v377
        %v593 = vpop.f32.mrf.mxu0
        %v594 = vadd.f32 %v277, %v593
        %v595 = vpop.f32.mrf.mxu0
        %v596 = vpop.f32.mrf.mxu0
        %v597 = vadd.f32 %v277, %v596
        %v598 = vpop.f32.mrf.mxu0
        %599 = vmatprep.mubr.bf16.mxu0 %v506
        %600 = vmatmul.mubr.bf16.gmra.mxu0 %v379
        %v601 = vpop.f32.mrf.mxu0
        %v602 = vadd.f32 %v277, %v601
        %v603 = vpop.f32.mrf.mxu0
        %v604 = vpop.f32.mrf.mxu0
        %v605 = vadd.f32 %v277, %v604
        %v606 = vpop.f32.mrf.mxu0
        %607 = vmatprep.mubr.bf16.mxu0 %v509
        %608 = vmatmul.mubr.bf16.gmra.mxu0 %v381
        %v609 = vpop.f32.mrf.mxu0
        %v610 = vadd.f32 %v277, %v609
        %v611 = vpop.f32.mrf.mxu0
        %v612 = vpop.f32.mrf.mxu0
        %v613 = vadd.f32 %v277, %v612
        %v614 = vpop.f32.mrf.mxu0
        %615 = vmatprep.mubr.bf16.mxu0 %v512
        %616 = vmatmul.mubr.bf16.gmra.mxu0 %v383
        %v617 = vpop.f32.mrf.mxu0
        %v618 = vadd.f32 %v277, %v617
        %v619 = vpop.f32.mrf.mxu0
        %v620 = vpop.f32.mrf.mxu0
        %v621 = vadd.f32 %v277, %v620
        %v622 = vpop.f32.mrf.mxu0
        %623 = vmatprep.mubr.bf16.mxu0 %v515
        %624 = vmatmul.mubr.bf16.gmra.mxu0 %v385
        %v625 = vpop.f32.mrf.mxu0
        %v626 = vadd.f32 %v277, %v625
        %v627 = vpop.f32.mrf.mxu0
        %v628 = vpop.f32.mrf.mxu0
        %v629 = vadd.f32 %v277, %v628
        %v630 = vpop.f32.mrf.mxu0
        %631 = vmatprep.mubr.bf16.mxu0 %v518
        %632 = vmatmul.mubr.bf16.gmra.mxu0 %v387
        %v633 = vpop.f32.mrf.mxu0
        %v634 = vadd.f32 %v277, %v633
        %v635 = vpop.f32.mrf.mxu0
        %v636 = vpop.f32.mrf.mxu0
        %v637 = vadd.f32 %v277, %v636
        %v638 = vpop.f32.mrf.mxu0
        %639 = vmatprep.mubr.bf16.mxu0 %v521
        %640 = vmatmul.mubr.bf16.gmra.mxu0 %v389
        %v641 = vpop.f32.mrf.mxu0
        %v642 = vadd.f32 %v277, %v641
        %v643 = vpop.f32.mrf.mxu0
        %v644 = vpop.f32.mrf.mxu0
        %v645 = vadd.f32 %v277, %v644
        %v646 = vpop.f32.mrf.mxu0
        %647 = vmatprep.mubr.bf16.mxu0 %v524
        %648 = vmatmul.mubr.bf16.gmra.mxu0 %v391
        %v649 = vpop.f32.mrf.mxu0
        %v650 = vadd.f32 %v277, %v649
        %v651 = vpop.f32.mrf.mxu0
        %v652 = vpop.f32.mrf.mxu0
        %v653 = vadd.f32 %v277, %v652
        %v654 = vpop.f32.mrf.mxu0
        %655 = vmatprep.mubr.bf16.mxu0 %v527
        %656 = vmatmul.mubr.bf16.gmra.mxu0 %v393
        %v657 = vpop.f32.mrf.mxu0
        %v658 = vadd.f32 %v277, %v657
        %v659 = vpop.f32.mrf.mxu0
        %v660 = vpop.f32.mrf.mxu0
        %v661 = vadd.f32 %v277, %v660
        %v662 = vpop.f32.mrf.mxu0
        %663 = vmatprep.mubr.bf16.mxu0 %v530
        %664 = vmatmul.mubr.bf16.gmra.mxu0 %v395
        %v665 = vpop.f32.mrf.mxu0
        %v666 = vadd.f32 %v277, %v665
        %v667 = vpop.f32.mrf.mxu0
        %v668 = vpop.f32.mrf.mxu0
        %v669 = vadd.f32 %v277, %v668
        %v670 = vpop.f32.mrf.mxu0
        %671 = vmatprep.mubr.bf16.mxu0 %v533
        %672 = vmatmul.mubr.bf16.gmra.mxu0 %v397
        %v673 = vpop.f32.mrf.mxu0
        %v674 = vadd.f32 %v277, %v673
        %v675 = vpop.f32.mrf.mxu0
        %v676 = vpop.f32.mrf.mxu0
        %v677 = vadd.f32 %v277, %v676
        %v678 = vpop.f32.mrf.mxu0
        %679 = vmatprep.mubr.bf16.mxu0 %v536
        %680 = vmatmul.mubr.bf16.gmra.mxu0 %v399
        %v681 = vpop.f32.mrf.mxu0
        %v682 = vadd.f32 %v277, %v681
        %v683 = vpop.f32.mrf.mxu0
        %v684 = vpop.f32.mrf.mxu0
        %v685 = vadd.f32 %v277, %v684
        %v686 = vpop.f32.mrf.mxu0
        %687 = vmatprep.mubr.bf16.mxu0 %v539
        %688 = vmatmul.mubr.bf16.gmra.mxu0 %v401
        %v689 = vpop.f32.mrf.mxu0
        %v690 = vadd.f32 %v277, %v689
        %v691 = vpop.f32.mrf.mxu0
        %v692 = vpop.f32.mrf.mxu0
        %v693 = vadd.f32 %v277, %v692
        %v694 = vpop.f32.mrf.mxu0
        %695 = vmatprep.mubr.bf16.mxu0 %v542
        %696 = vmatmul.mubr.bf16.gmra.mxu0 %v403
        %v697 = vpop.f32.mrf.mxu0
        %v698 = vadd.f32 %v277, %v697
        %v699 = vpop.f32.mrf.mxu0
        %v700 = vpop.f32.mrf.mxu0
        %v701 = vadd.f32 %v277, %v700
        %v702 = vpop.f32.mrf.mxu0
        %703 = vmatprep.mubr.bf16.mxu0 %v545
        %704 = vmatmul.mubr.bf16.gmra.mxu0 %v405
        %v705 = vpop.f32.mrf.mxu0
        %v706 = vadd.f32 %v277, %v705
        %v707 = vpop.f32.mrf.mxu0
        %v708 = vpop.f32.mrf.mxu0
        %v709 = vadd.f32 %v277, %v708
        %v710 = vpop.f32.mrf.mxu0
        %711 = vdwg.mxu0
        %v712 = vmul.f32 %v586, 0.1
        %v713 = vmul.f32 %v589, 0.1
        %v714 = vmul.f32 %v594, 0.1
        %v715 = vmul.f32 %v597, 0.1
        %v716 = vmul.f32 %v602, 0.1
        %v717 = vmul.f32 %v605, 0.1
        %v718 = vmul.f32 %v610, 0.1
        %v719 = vmul.f32 %v613, 0.1
        %v720 = vmul.f32 %v618, 0.1
        %v721 = vmul.f32 %v621, 0.1
        %v722 = vmul.f32 %v626, 0.1
        %v723 = vmul.f32 %v629, 0.1
        %v724 = vmul.f32 %v634, 0.1
        %v725 = vmul.f32 %v637, 0.1
        %v726 = vmul.f32 %v642, 0.1
        %v727 = vmul.f32 %v645, 0.1
        %v728 = vmul.f32 %v650, 0.1
        %v729 = vmul.f32 %v653, 0.1
        %v730 = vmul.f32 %v658, 0.1
        %v731 = vmul.f32 %v661, 0.1
        %v732 = vmul.f32 %v666, 0.1
        %v733 = vmul.f32 %v669, 0.1
        %v734 = vmul.f32 %v674, 0.1
        %v735 = vmul.f32 %v677, 0.1
        %v736 = vmul.f32 %v682, 0.1
        %v737 = vmul.f32 %v685, 0.1
        %v738 = vmul.f32 %v690, 0.1
        %v739 = vmul.f32 %v693, 0.1
        %v740 = vmul.f32 %v698, 0.1
        %v741 = vmul.f32 %v701, 0.1
        %v742 = vmul.f32 %v706, 0.1
        %v743 = vmul.f32 %v709, 0.1
        %v744 = vmax.f32 %v586, %v712
        %v745 = vmax.f32 %v589, %v713
        %v746 = vmax.f32 %v594, %v714
        %v747 = vmax.f32 %v597, %v715
        %v748 = vmax.f32 %v602, %v716
        %v749 = vmax.f32 %v605, %v717
        %v750 = vmax.f32 %v610, %v718
        %v751 = vmax.f32 %v613, %v719
        %v752 = vmax.f32 %v618, %v720
        %v753 = vmax.f32 %v621, %v721
        %v754 = vmax.f32 %v626, %v722
        %v755 = vmax.f32 %v629, %v723
        %v756 = vmax.f32 %v634, %v724
        %v757 = vmax.f32 %v637, %v725
        %v758 = vmax.f32 %v642, %v726
        %v759 = vmax.f32 %v645, %v727
        %v760 = vmax.f32 %v650, %v728
        %v761 = vmax.f32 %v653, %v729
        %v762 = vmax.f32 %v658, %v730
        %v763 = vmax.f32 %v661, %v731
        %v764 = vmax.f32 %v666, %v732
        %v765 = vmax.f32 %v669, %v733
        %v766 = vmax.f32 %v674, %v734
        %v767 = vmax.f32 %v677, %v735
        %v768 = vmax.f32 %v682, %v736
        %v769 = vmax.f32 %v685, %v737
        %v770 = vmax.f32 %v690, %v738
        %v771 = vmax.f32 %v693, %v739
        %v772 = vmax.f32 %v698, %v740
        %v773 = vmax.f32 %v701, %v741
        %v774 = vmax.f32 %v706, %v742
        %v775 = vmax.f32 %v709, %v743
        %v776 = vpack.c.bf16 %v745, %v744
        %v777 = vpack.c.bf16 %v747, %v746
        %v778 = vpack.c.bf16 %v749, %v748
        %v779 = vpack.c.bf16 %v751, %v750
        %v780 = vpack.c.bf16 %v753, %v752
        %v781 = vpack.c.bf16 %v755, %v754
        %v782 = vpack.c.bf16 %v757, %v756
        %v783 = vpack.c.bf16 %v759, %v758
        %v784 = vpack.c.bf16 %v761, %v760
        %v785 = vpack.c.bf16 %v763, %v762
        %v786 = vpack.c.bf16 %v765, %v764
        %v787 = vpack.c.bf16 %v767, %v766
        %v788 = vpack.c.bf16 %v769, %v768
        %v789 = vpack.c.bf16 %v771, %v770
        %v790 = vpack.c.bf16 %v773, %v772
        %v791 = vpack.c.bf16 %v775, %v774
        %v808 = vunpack.c.l.b16 %v776
        %v809 = vunpack.c.h.b16 %v776
        %v810 = vunpack.c.l.b16 %v777
        %v811 = vunpack.c.h.b16 %v777
        %v812 = vunpack.c.l.b16 %v778
        %v813 = vunpack.c.h.b16 %v778
        %v814 = vunpack.c.l.b16 %v779
        %v815 = vunpack.c.h.b16 %v779
        %v816 = vunpack.c.l.b16 %v780
        %v817 = vunpack.c.h.b16 %v780
        %v818 = vunpack.c.l.b16 %v781
        %v819 = vunpack.c.h.b16 %v781
        %v820 = vunpack.c.l.b16 %v782
        %v821 = vunpack.c.h.b16 %v782
        %v822 = vunpack.c.l.b16 %v783
        %v823 = vunpack.c.h.b16 %v783
        %v824 = vunpack.c.l.b16 %v784
        %v825 = vunpack.c.h.b16 %v784
        %v826 = vunpack.c.l.b16 %v785
        %v827 = vunpack.c.h.b16 %v785
        %v828 = vunpack.c.l.b16 %v786
        %v829 = vunpack.c.h.b16 %v786
        %v830 = vunpack.c.l.b16 %v787
        %v831 = vunpack.c.h.b16 %v787
        %v832 = vunpack.c.l.b16 %v788
        %v833 = vunpack.c.h.b16 %v788
        %v834 = vunpack.c.l.b16 %v789
        %v835 = vunpack.c.h.b16 %v789
        %v836 = vunpack.c.l.b16 %v790
        %v837 = vunpack.c.h.b16 %v790
        %v838 = vunpack.c.l.b16 %v791
        %v839 = vunpack.c.h.b16 %v791
        %v840 = vpack.c.b16 %v808, %v808
        %v841 = vpack.c.b16 %v809, %v809
        %v842 = vpack.c.b16 %v810, %v810
        %v843 = vpack.c.b16 %v811, %v811
        %v844 = vpack.c.b16 %v812, %v812
        %v845 = vpack.c.b16 %v813, %v813
        %v846 = vpack.c.b16 %v814, %v814
        %v847 = vpack.c.b16 %v815, %v815
        %v848 = vpack.c.b16 %v816, %v816
        %v849 = vpack.c.b16 %v817, %v817
        %v850 = vpack.c.b16 %v818, %v818
        %v851 = vpack.c.b16 %v819, %v819
        %v852 = vpack.c.b16 %v820, %v820
        %v853 = vpack.c.b16 %v821, %v821
        %v854 = vpack.c.b16 %v822, %v822
        %v855 = vpack.c.b16 %v823, %v823
        %v856 = vpack.c.b16 %v824, %v824
        %v857 = vpack.c.b16 %v825, %v825
        %v858 = vpack.c.b16 %v826, %v826
        %v859 = vpack.c.b16 %v827, %v827
        %v860 = vpack.c.b16 %v828, %v828
        %v861 = vpack.c.b16 %v829, %v829
        %v862 = vpack.c.b16 %v830, %v830
        %v863 = vpack.c.b16 %v831, %v831
        %v864 = vpack.c.b16 %v832, %v832
        %v865 = vpack.c.b16 %v833, %v833
        %v866 = vpack.c.b16 %v834, %v834
        %v867 = vpack.c.b16 %v835, %v835
        %v868 = vpack.c.b16 %v836, %v836
        %v869 = vpack.c.b16 %v837, %v837
        %v870 = vpack.c.b16 %v838, %v838
        %v871 = vpack.c.b16 %v839, %v839
        %904 = vst [vmem:[%s201] sm:$0xf] %v840
        %905 = vst [vmem:[%s201 + $0x4] sm:$0xf] %v841
        %906 = vst [vmem:[%s201 + $0x8] sm:$0xf] %v842
        %907 = vst [vmem:[%s201 + $0xc] sm:$0xf] %v843
        %908 = vst [vmem:[%s201 + $0x10] sm:$0xf] %v844
        %909 = vst [vmem:[%s201 + $0x14] sm:$0xf] %v845
        %910 = vst [vmem:[%s201 + $0x18] sm:$0xf] %v846
        %911 = vst [vmem:[%s201 + $0x1c] sm:$0xf] %v847
        %912 = vst [vmem:[%s201 + $0x20] sm:$0xf] %v848
        %913 = vst [vmem:[%s201 + $0x24] sm:$0xf] %v849
        %914 = vst [vmem:[%s201 + $0x28] sm:$0xf] %v850
        %915 = vst [vmem:[%s201 + $0x2c] sm:$0xf] %v851
        %916 = vst [vmem:[%s201 + $0x30] sm:$0xf] %v852
        %917 = vst [vmem:[%s201 + $0x34] sm:$0xf] %v853
        %918 = vst [vmem:[%s201 + $0x38] sm:$0xf] %v854
        %919 = vst [vmem:[%s201 + $0x3c] sm:$0xf] %v855
        %920 = vst [vmem:[%s201 + $0x40] sm:$0xf] %v856
        %921 = vst [vmem:[%s201 + $0x44] sm:$0xf] %v857
        %922 = vst [vmem:[%s201 + $0x48] sm:$0xf] %v858
        %923 = vst [vmem:[%s201 + $0x4c] sm:$0xf] %v859
        %924 = vst [vmem:[%s201 + $0x50] sm:$0xf] %v860
        %925 = vst [vmem:[%s201 + $0x54] sm:$0xf] %v861
        %926 = vst [vmem:[%s201 + $0x58] sm:$0xf] %v862
        %927 = vst [vmem:[%s201 + $0x5c] sm:$0xf] %v863
        %928 = vst [vmem:[%s201 + $0x60] sm:$0xf] %v864
        %929 = vst [vmem:[%s201 + $0x64] sm:$0xf] %v865
        %930 = vst [vmem:[%s201 + $0x68] sm:$0xf] %v866
        %931 = vst [vmem:[%s201 + $0x6c] sm:$0xf] %v867
        %932 = vst [vmem:[%s201 + $0x70] sm:$0xf] %v868
        %933 = vst [vmem:[%s201 + $0x74] sm:$0xf] %v869
        %934 = vst [vmem:[%s201 + $0x78] sm:$0xf] %v870
        %935 = vst [vmem:[%s201 + $0x7c] sm:$0xf] %v871
        %s936 = sand.u32 %s117, 1
        %s937 = scalar_lea.sflag [#allocation3], %s936
        %s938 = sand.u32 %s117, 1
        %s939 = smul.addr %s938, 128
        %s940 = scalar_lea.vmem [#allocation2], %s939
        // Predicated region
        $region33: #{tpu_custom_call.1} parent=31 // pred_check
          %p941 = pneg %p127
        $region34: #{tpu_custom_call.1} parent=31 // pred_check_branch
          %943 = sbr.rel (%p941) target = $region36
        $region35: #{tpu_custom_call.1} parent=31 // pred_region
          %s945 = ssub.s32 2048, 2048
          %946 = vsyncadd %s937, %s945
          %s947 = smul.addr %s22, 32
          %s948 = sadd.s32 %s21, %s947
          %s949 = smul.addr %s948, 64
          %s950 = scalar_lea.hbm %s3, %s949
          %s951 = sshll.u32 %s940, 4
          %s952 = int_to_ptr.vmem [resolvable:$true] %s951
          %957 = dma.vmem_to_hbm [thread:$0]  %s952, 2048, %s950, %s937, 64, 64, 4
        $region36: #{tpu_custom_call.1} parent=31 // pred_fallthru
          _
      $region32: #{tpu_custom_call.1} parent=5 // pred_fallthru
        _
      %p958 = scmp.le.s32.totalorder 2, %s12
      // Predicated region
      $region37: #{tpu_custom_call.1} parent=5 // pred_check
        %p959 = pneg %p958
      $region38: #{tpu_custom_call.1} parent=5 // pred_check_branch
        %961 = sbr.rel (%p959) target = $region40
      $region39: #{tpu_custom_call.1} parent=5 // pred_region
        %s962 = ssub.s32 %s12, 2
        // Predicated region
        $region41: #{tpu_custom_call.1} parent=39 // pred_check
          %p963 = pneg %p133
        $region42: #{tpu_custom_call.1} parent=39 // pred_check_branch
          %965 = sbr.rel (%p963) target = $region44
        $region43: #{tpu_custom_call.1} parent=39 // pred_region
          %s966 = sand.u32 %s118, 1
          %s967 = scalar_lea.sflag [#allocation3], %s966
          %s968 = sand.u32 %s118, 1
          %s969 = smul.addr %s968, 128
          %s970 = scalar_lea.vmem [#allocation2], %s969
          %971 = dma.done %s967, 2048
        $region44: #{tpu_custom_call.1} parent=39 // pred_fallthru
          _
      $region40: #{tpu_custom_call.1} parent=5 // pred_fallthru
        _
    $region6: #{tpu_custom_call.1} parent=1 // loop_footer
      %s16 = sadd.s32 1, %s12
    $region7: #{tpu_custom_call.1} parent=1 // loop_footer_branch
      %11 = sbr.rel target = $region3
    $region8: #{tpu_custom_call.1} parent=1 // loop_exit
      _
    %972 = vsyncpa [#allocation3], 1
    %s973 = scalar_lea.sflag [#allocation3], 1
    %974 = vsyncpa %s973, 1

</llo_original>
